<compile_context>
chip_gen: v7x
topology: tpu7x:2x2x1
jax: 0.10.0
libtpu: 0.0.40
codegen_flags: <defaults>
</compile_context>

<pallas_src>
import functools
import math
from typing import List, Tuple

import jax
import jax.numpy as jnp
from jax.experimental import pallas as pl
from jax.experimental.pallas import tpu as pltpu


_MAX_K_TILE = 512  # streamed reduction tile (multiple of 128); keeps the live
                   # VMEM footprint ~15-20 MB even for ~1000x1500 inputs, safe
                   # under v5e's 16 MiB default scope (we raise it when needed)
                   # and v7x's 64 MiB physical VMEM.


# ----------------------------------------------------------------------------
# glue (plain JAX / Python): interpolation-matrix construction, size math
# ----------------------------------------------------------------------------
def _compute_resized_hw(h: int, w: int, min_size: int, max_size: int) -> Tuple[int, int]:
    """Output (H, W) exactly as _resize_image computes it (floor(in * scale))."""
    min_s = float(min(h, w))
    max_s = float(max(h, w))
    scale = float(min_size) / min_s
    if max_s * scale > float(max_size):
        scale = float(max_size) / max_s
    return int(math.floor(h * scale)), int(math.floor(w * scale))


def _interp_matrix(in_size: int, out_size: int, pad_size: int) -> jnp.ndarray:
    """(pad_size, in_size) matrix reproducing F.interpolate bilinear,
    align_corners=False, recompute_scale_factor=True along one axis.
    Rows >= out_size are all-zero (implements return_batch zero padding)."""
    scale = in_size / out_size  # recomputed scale = in / out
    dst = jnp.arange(out_size, dtype=jnp.float32)
    src = jnp.maximum((dst + 0.5) * scale - 0.5, 0.0)  # clamp negative src to 0
    i0 = jnp.minimum(jnp.floor(src).astype(jnp.int32), in_size - 1)
    i1 = jnp.minimum(i0 + 1, in_size - 1)
    lam1 = src - i0.astype(jnp.float32)
    lam0 = 1.0 - lam1
    rows = jnp.arange(out_size)
    w = jnp.zeros((out_size, in_size), jnp.float32)
    w = w.at[rows, i0].add(lam0)
    w = w.at[rows, i1].add(lam1)
    return jnp.pad(w, ((0, pad_size - out_size), (0, 0)))


# ----------------------------------------------------------------------------
# Pallas kernel (the hot path)
# ----------------------------------------------------------------------------
def _norm_resize_kernel(mean_ref, inv_std_ref, wh_ref, wwt_ref, img_ref,
                        canvas_ref, out_ref, *, reduce_h, k_tile, k_size):
    """Grid = (channel, k_tile).  Accumulates one K-tile contribution of
         out[c] = Wh @ ((img[c]-mean[c])*inv_std[c]) @ Ww^T
       into the resident (H_pad, W_pad) f32 output block.
       reduce_h=False -> order A: out += (Wh @ x_tile) @ WwT_tile  (K = W_in)
       reduce_h=True  -> order B: out += Wh_tile @ (x_tile @ WwT)  (K = H_in)"""
    del canvas_ref  # aliased to the output; accessed only through out_ref
    c = pl.program_id(0)
    k = pl.program_id(1)

    # normalize in-kernel on the VPU (source-dtype DMA; multiply, not divide)
    x = img_ref[...].astype(jnp.float32)
    x = (x - mean_ref[c]) * inv_std_ref[c]

    if k_size % k_tile != 0:
        # last K tile of the image is partial: mask out-of-range K positions
        # (the streamed weight matrix is zero-padded on K at build time, this
        # mask additionally guards against NaN garbage in the padded region)
        axis = 0 if reduce_h else 1
        idx = jax.lax.broadcasted_iota(jnp.int32, x.shape, axis)
        x = jnp.where(idx < (k_size - k * k_tile), x, 0.0)

    xb = x.astype(jnp.bfloat16)  # bf16 MXU path, f32 accumulation below

    if reduce_h:
        tmp = jnp.dot(xb, wwt_ref[...], preferred_element_type=jnp.float32)
        contrib = jnp.dot(wh_ref[...], tmp.astype(jnp.bfloat16),
                          preferred_element_type=jnp.float32)
    else:
        tmp = jnp.dot(wh_ref[...], xb, preferred_element_type=jnp.float32)
        contrib = jnp.dot(tmp.astype(jnp.bfloat16), wwt_ref[...],
                          preferred_element_type=jnp.float32)

    @pl.when(k == 0)
    def _():
        out_ref[...] = jnp.zeros_like(out_ref)

    out_ref[...] += contrib


def _resize_one_into(canvas, image, mean, inv_std, b_idx, h_pad, w_pad, out_h, out_w):
    """Fused normalize+resize+pad of one image, written in place into
    canvas[b_idx] via input_output_aliases.  Returns the updated canvas."""
    c_dim, h_in, w_in = image.shape
    wh = _interp_matrix(h_in, out_h, h_pad)       # (h_pad, h_in)
    wwt = _interp_matrix(w_in, out_w, w_pad).T    # (w_in,  w_pad)

    # static association-order choice: fewer MXU flops + smaller temporaries
    cost_a = h_pad * w_in * (h_in + w_pad)        # (Wh @ x) @ Ww^T, K = W_in
    cost_b = h_in * w_pad * (w_in + h_pad)        # Wh @ (x @ Ww^T), K = H_in
    reduce_h = cost_b < cost_a
    k_size = h_in if reduce_h else w_in

    if k_size > _MAX_K_TILE:
        k_tile = _MAX_K_TILE                      # multiple of 128
        num_k = (k_size + k_tile - 1) // k_tile
    else:
        k_tile = k_size                           # single full-K tile
        num_k = 1
    k_padded = num_k * k_tile

    # weight matrices: zero-pad the streamed K axis to the tile grid so every
    # streamed tile is complete; bf16 for native MXU throughput + half the DMA
    if reduce_h:
        wh = jnp.pad(wh, ((0, 0), (0, k_padded - k_size)))
    else:
        wwt = jnp.pad(wwt, ((0, k_padded - k_size), (0, 0)))
    wh = wh.astype(jnp.bfloat16)
    wwt = wwt.astype(jnp.bfloat16)

    if reduce_h:
        wh_spec = pl.BlockSpec((h_pad, k_tile), lambda c, k: (0, k))
        wwt_spec = pl.BlockSpec((w_in, w_pad), lambda c, k: (0, 0))
        img_spec = pl.BlockSpec((None, k_tile, w_in), lambda c, k: (c, k, 0))
        img_block = k_tile * w_in
        wh_block = h_pad * k_tile
        wwt_block = w_in * w_pad
    else:
        wh_spec = pl.BlockSpec((h_pad, h_in), lambda c, k: (0, 0))
        wwt_spec = pl.BlockSpec((k_tile, w_pad), lambda c, k: (k, 0))
        img_spec = pl.BlockSpec((None, h_in, k_tile), lambda c, k: (c, 0, k))
        img_block = h_in * k_tile
        wh_block = h_pad * h_in
        wwt_block = k_tile * w_pad

    out_spec = pl.BlockSpec((None, None, h_pad, w_pad),
                            lambda c, k, b=b_idx: (b, c, 0, 0))

    # VMEM footprint: double-buffered inputs + resident output + temp headroom;
    # only raise the scoped limit when the defaults (16 MiB v5e) may not fit.
    out_block_bytes = h_pad * w_pad * 4
    footprint = (2 * (img_block * image.dtype.itemsize + 2 * wh_block + 2 * wwt_block
                      + out_block_bytes) + 3 * out_block_bytes)
    vmem_limit = None
    if footprint > 12 * 2 ** 20:
        vmem_limit = int(min(max(2 * footprint, 32 * 2 ** 20), 64 * 2 ** 20))

    flops = 2 * c_dim * min(cost_a, cost_b)
    bytes_accessed = int(image.size * image.dtype.itemsize
                         + wh.size * wh.dtype.itemsize
                         + wwt.size * wwt.dtype.itemsize
                         + c_dim * h_pad * w_pad * 4)

    kernel = functools.partial(_norm_resize_kernel, reduce_h=reduce_h,
                               k_tile=k_tile, k_size=k_size)

    return pl.pallas_call(
        kernel,
        out_shape=jax.ShapeDtypeStruct(canvas.shape, canvas.dtype),
        grid=(c_dim, num_k),
        in_specs=[
            pl.BlockSpec(memory_space=pltpu.MemorySpace.SMEM),   # mean (3,)
            pl.BlockSpec(memory_space=pltpu.MemorySpace.SMEM),   # inv_std (3,)
            wh_spec,
            wwt_spec,
            img_spec,
            pl.BlockSpec(memory_space=pl.ANY),                   # canvas (aliased)
        ],
        out_specs=out_spec,
        input_output_aliases={5: 0},
        compiler_params=pltpu.CompilerParams(
            dimension_semantics=("parallel", "arbitrary"),
            vmem_limit_bytes=vmem_limit),
        cost_estimate=pl.CostEstimate(flops=int(flops), transcendentals=0,
                                      bytes_accessed=bytes_accessed),
    )(mean, inv_std, wh, wwt, image, canvas)


# ----------------------------------------------------------------------------
# module re-implementation
# ----------------------------------------------------------------------------
class ImageList:
    def __init__(self, tensors, image_sizes):
        self.tensors = tensors
        self.image_sizes = image_sizes


class GeneralizedViBERTgridTransformPallas:
    def __init__(self, image_mean, image_std, train_min_size,
                 test_min_size: int = 512, max_size: int = 800):
        if isinstance(image_mean, float):
            image_mean = [image_mean] * 3
        if isinstance(image_std, float):
            image_std = [image_std] * 3
        assert len(image_mean) == 3 and len(image_std) == 3
        self.image_mean = jnp.asarray(image_mean, jnp.float32)
        self.image_std = jnp.asarray(image_std, jnp.float32)
        self.inv_image_std = 1.0 / self.image_std     # multiply in-kernel, no divide
        self.train_min_size_list = list(train_min_size)
        self.test_min_size = int(test_min_size)
        self.max_size = int(max_size)
        # TODO(synk): torch_choice (host RNG train-time min-size pick) not ported;
        # the deterministic eval path (test_min_size) is implemented.
        self.training = False

    @staticmethod
    def _resize_coor(coor, orig_shape, resize_shape):
        # Lane-sparse (N,4) int work: a per-image Pallas launch is pure overhead,
        # so this stays as two fused XLA ops (matches torch float-mul + int trunc).
        rh = float(resize_shape[0]) / float(orig_shape[0])
        rw = float(resize_shape[1]) / float(orig_shape[1])
        scale = jnp.asarray([rh, rw, rh, rw], jnp.float32)
        return (coor.astype(jnp.float32) * scale).astype(jnp.int32)

    def __call__(self, images, ocr_coors):
        images = list(images)
        ocr_coors = list(ocr_coors)
        assert all(img.ndim == 3 for img in images)

        resize_shapes = [
            _compute_resized_hw(img.shape[1], img.shape[2],
                                self.test_min_size, self.max_size)
            for img in images
        ]
        c_dim = images[0].shape[0]
        # TODO(synk): channel-dim padding (max_by_axis over C) skipped; all real
        # inputs of this module are 3-channel.
        assert all(img.shape[0] == c_dim for img in images)
        stride = 32
        h_pad = int(math.ceil(max(s[0] for s in resize_shapes) / stride) * stride)
        w_pad = int(math.ceil(max(s[1] for s in resize_shapes) / stride) * stride)

        # One batch canvas; each per-image call writes its (C,Hp,Wp) slice in
        # place (input_output_aliases) -> no jnp.stack HBM round trip.
        canvas = jnp.zeros((len(images), c_dim, h_pad, w_pad), jnp.float32)
        image_sizes = []
        for i, img in enumerate(images):
            out_h, out_w = resize_shapes[i]
            canvas = _resize_one_into(canvas, img, self.image_mean, self.inv_image_std,
                                      i, h_pad, w_pad, out_h, out_w)
            image_sizes.append((out_h, out_w))
            if ocr_coors[i] is not None:
                ocr_coors[i] = self._resize_coor(ocr_coors[i], img.shape[-2:],
                                                 (out_h, out_w))

        return ImageList(canvas, image_sizes), ocr_coors


# ----------------------------------------------------------------------------
# demo / correctness check
# ----------------------------------------------------------------------------
if __name__ == "__main__":
    key = jax.random.PRNGKey(0)
    k1, k2, k3, k4 = jax.random.split(key, 4)
    # two images with different CHW sizes, like the torch module's list input
    img0 = jax.random.uniform(k1, (3, 24, 20), jnp.float32)
    img1 = jax.random.uniform(k2, (3, 16, 28), jnp.float32)
    coor0 = jax.random.randint(k3, (8, 4), 0, 20, dtype=jnp.int32)
    coor1 = jax.random.randint(k4, (8, 4), 0, 16, dtype=jnp.int32)

    transform = GeneralizedViBERTgridTransformPallas(
        image_mean=[0.485, 0.456, 0.406],
        image_std=[0.229, 0.224, 0.225],
        train_min_size=[16, 24],
        test_min_size=24,
        max_size=32,
    )

    image_list, coors = transform((img0, img1), (coor0, coor1))
    jax.block_until_ready(image_list.tensors)
    jax.block_until_ready(coors)

    # ---- sanity check vs. plain-JAX f32 reference of the same math ----
    mean = transform.image_mean
    std = transform.image_std
    B, C, Hp, Wp = image_list.tensors.shape
    for i, (img, coor) in enumerate(((img0, coor0), (img1, coor1))):
        h_in, w_in = img.shape[-2:]
        out_h, out_w = _compute_resized_hw(h_in, w_in,
                                           transform.test_min_size, transform.max_size)
        assert image_list.image_sizes[i] == (out_h, out_w)
        wh = _interp_matrix(h_in, out_h, Hp)
        wwt = _interp_matrix(w_in, out_w, Wp).T
        norm = (img - mean[:, None, None]) / std[:, None, None]
        ref_img = jnp.einsum("oh,chw,wp->cop", wh, norm, wwt)
        # kernel uses bf16 MXU inputs with f32 accumulation -> loose tolerance
        err = float(jnp.max(jnp.abs(image_list.tensors[i] - ref_img)))
        assert jnp.allclose(image_list.tensors[i], ref_img, rtol=5e-2, atol=5e-2), err

        rh, rw = out_h / h_in, out_w / w_in
        cf = coor.astype(jnp.float32)
        ref_coor = jnp.stack(
            [cf[:, 0] * rh, cf[:, 1] * rw, cf[:, 2] * rh, cf[:, 3] * rw], axis=1
        ).astype(jnp.int32)
        assert jnp.array_equal(coors[i], ref_coor)

    print("KERNEL_OK")
</pallas_src>

<mosaic_0001>
module attributes {stable_mosaic.version = 11 : i64} {
  func.func @_norm_resize_kernel(%arg0: i32, %arg1: i32, %arg2: memref<3xf32, #tpu.memory_space<smem>>, %arg3: memref<3xf32, #tpu.memory_space<smem>>, %arg4: memref<32x24xbf16, #tpu.memory_space<vmem>>, %arg5: memref<20x32xbf16, #tpu.memory_space<vmem>>, %arg6: memref<1x24x20xf32, #tpu.memory_space<vmem>>, %arg7: memref<2x3x32x32xf32, #tpu.memory_space<any>>, %arg8: memref<1x1x32x32xf32, #tpu.memory_space<vmem>>) attributes {dimension_semantics = [#tpu.dimension_semantics<parallel>, #tpu.dimension_semantics<arbitrary>], iteration_bounds = array<i64: 3, 1>, scalar_prefetch = 0 : i64, scratch_operands = 0 : i64, tpu.core_type = #tpu.core_type<tc>, window_params = [{transform_indices = @transform_0, window_bounds = array<i64: 3>}, {transform_indices = @transform_1, window_bounds = array<i64: 3>}, {pipeline_mode = #tpu.pipeline_mode<synchronous>, transform_indices = @transform_2, window_bounds = array<i64: 32, 24>}, {transform_indices = @transform_3, window_bounds = array<i64: 20, 32>}, {transform_indices = @transform_4, window_bounds = array<i64: 1, 24, 20>}, {}, {transform_indices = @transform_6, window_bounds = array<i64: 1, 1, 32, 32>}]} {
    %c0 = arith.constant 0 : index
    %c0_0 = arith.constant 0 : index
    %c0_1 = arith.constant 0 : index
    %0 = vector.load %arg6[%c0, %c0_0, %c0_1] : memref<1x24x20xf32, #tpu.memory_space<vmem>>, vector<1x24x20xf32>
    %1 = vector.shape_cast %0 : vector<1x24x20xf32> to vector<24x20xf32>
    %2 = arith.index_cast %arg0 : i32 to index
    %3 = memref.load %arg2[%2] : memref<3xf32, #tpu.memory_space<smem>>
    %4 = vector.broadcast %3 : f32 to vector<24x20xf32>
    %5 = arith.subf %1, %4 : vector<24x20xf32>
    %6 = arith.index_cast %arg0 : i32 to index
    %7 = memref.load %arg3[%6] : memref<3xf32, #tpu.memory_space<smem>>
    %8 = vector.broadcast %7 : f32 to vector<24x20xf32>
    %9 = arith.mulf %5, %8 : vector<24x20xf32>
    %10 = arith.truncf %9 : vector<24x20xf32> to vector<24x20xbf16>
    %c0_2 = arith.constant 0 : index
    %c0_3 = arith.constant 0 : index
    %11 = vector.load %arg4[%c0_2, %c0_3] : memref<32x24xbf16, #tpu.memory_space<vmem>>, vector<32x24xbf16>
    %cst = arith.constant dense<0.000000e+00> : vector<32x20xf32>
    %12 = tpu.matmul %11, %10, %cst {dimension_numbers = #tpu.dot_dimension_numbers<[1], [0], [0], [1], [0, 0, 1, 1], [], []>} : vector<32x24xbf16>, vector<24x20xbf16>, vector<32x20xf32> -> vector<32x20xf32>
    %13 = arith.truncf %12 : vector<32x20xf32> to vector<32x20xbf16>
    %c0_4 = arith.constant 0 : index
    %c0_5 = arith.constant 0 : index
    %14 = vector.load %arg5[%c0_4, %c0_5] : memref<20x32xbf16, #tpu.memory_space<vmem>>, vector<20x32xbf16>
    %cst_6 = arith.constant dense<0.000000e+00> : vector<32x32xf32>
    %15 = tpu.matmul %13, %14, %cst_6 {dimension_numbers = #tpu.dot_dimension_numbers<[1], [0], [0], [1], [0, 0, 1, 1], [], []>} : vector<32x20xbf16>, vector<20x32xbf16>, vector<32x32xf32> -> vector<32x32xf32>
    %c0_i32 = arith.constant 0 : i32
    %16 = arith.cmpi eq, %arg1, %c0_i32 : i32
    %17 = arith.extui %16 : i1 to i32
    %c0_i32_7 = arith.constant 0 : i32
    %18 = arith.cmpi ne, %17, %c0_i32_7 : i32
    scf.if %18 {
      %cst_16 = arith.constant 0.000000e+00 : f32
      %25 = vector.broadcast %cst_16 : f32 to vector<32x32xf32>
      %c0_17 = arith.constant 0 : index
      %c0_18 = arith.constant 0 : index
      %c0_19 = arith.constant 0 : index
      %c0_20 = arith.constant 0 : index
      %26 = vector.load %arg8[%c0_17, %c0_18, %c0_19, %c0_20] : memref<1x1x32x32xf32, #tpu.memory_space<vmem>>, vector<1x1x32x32xf32>
      %27 = vector.shape_cast %26 : vector<1x1x32x32xf32> to vector<32x32xf32>
      %28 = vector.shape_cast %25 : vector<32x32xf32> to vector<1x1x32x32xf32>
      tpu.vector_store %arg8[%c0_17, %c0_18, %c0_19, %c0_20], %28 {strides = array<i32>} : memref<1x1x32x32xf32, #tpu.memory_space<vmem>>, vector<1x1x32x32xf32>,
    } else {
    }
    %c0_8 = arith.constant 0 : index
    %c0_9 = arith.constant 0 : index
    %c0_10 = arith.constant 0 : index
    %c0_11 = arith.constant 0 : index
    %19 = vector.load %arg8[%c0_8, %c0_9, %c0_10, %c0_11] : memref<1x1x32x32xf32, #tpu.memory_space<vmem>>, vector<1x1x32x32xf32>
    %20 = vector.shape_cast %19 : vector<1x1x32x32xf32> to vector<32x32xf32>
    %21 = arith.addf %20, %15 : vector<32x32xf32>
    %c0_12 = arith.constant 0 : index
    %c0_13 = arith.constant 0 : index
    %c0_14 = arith.constant 0 : index
    %c0_15 = arith.constant 0 : index
    %22 = vector.load %arg8[%c0_12, %c0_13, %c0_14, %c0_15] : memref<1x1x32x32xf32, #tpu.memory_space<vmem>>, vector<1x1x32x32xf32>
    %23 = vector.shape_cast %22 : vector<1x1x32x32xf32> to vector<32x32xf32>
    %24 = vector.shape_cast %21 : vector<32x32xf32> to vector<1x1x32x32xf32>
    tpu.vector_store %arg8[%c0_12, %c0_13, %c0_14, %c0_15], %24 {strides = array<i32>} : memref<1x1x32x32xf32, #tpu.memory_space<vmem>>, vector<1x1x32x32xf32>,
    return
  }
  func.func @transform_0(%arg0: i32, %arg1: i32) -> i32 {
    %c0_i32 = arith.constant 0 : i32
    %c0_i32_0 = arith.constant 0 : i32
    return %c0_i32 : i32
  }
  func.func @transform_1(%arg0: i32, %arg1: i32) -> i32 {
    %c0_i32 = arith.constant 0 : i32
    %c0_i32_0 = arith.constant 0 : i32
    return %c0_i32 : i32
  }
  func.func @transform_2(%arg0: i32, %arg1: i32) -> (i32, i32) {
    %c0_i32 = arith.constant 0 : i32
    %c0_i32_0 = arith.constant 0 : i32
    %c0_i32_1 = arith.constant 0 : i32
    return %c0_i32, %c0_i32_0 : i32, i32
  }
  func.func @transform_3(%arg0: i32, %arg1: i32) -> (i32, i32) {
    %c0_i32 = arith.constant 0 : i32
    %c0_i32_0 = arith.constant 0 : i32
    return %arg1, %c0_i32 : i32, i32
  }
  func.func @transform_4(%arg0: i32, %arg1: i32) -> (i32, i32, i32) {
    %c0_i32 = arith.constant 0 : i32
    %c0_i32_0 = arith.constant 0 : i32
    return %arg0, %c0_i32, %arg1 : i32, i32, i32
  }
  func.func @transform_6(%arg0: i32, %arg1: i32) -> (i32, i32, i32, i32) {
    %c0_i32 = arith.constant 0 : i32
    %c0_i32_0 = arith.constant 0 : i32
    %c0_i32_1 = arith.constant 0 : i32
    %c0_i32_2 = arith.constant 0 : i32
    return %c0_i32, %arg0, %c0_i32_0, %c0_i32_1 : i32, i32, i32, i32
  }
}

</mosaic_0001>

<llo_original>
// kernel: tpu_custom_call.1
$region0: #{tpu_custom_call.1}
  #allocation0 [shape = 'u32[]', space=smem, size = 0x4, offset = 0x4, fixed_abs, tag = 'smem constant byte address 0x4 - core index']
  #allocation1 [shape = 'u32[144,128]{1,0:T(1,128)}', space=vmem, size = 0x12000, scoped, tag = 'internal scratch']
  %s0 = inlined_call_operand.vmem [shape: f32[3], index: 0, kind: input, shape index: {}]
  %s1 = inlined_call_operand.vmem [shape: f32[3], index: 1, kind: input, shape index: {}]
  %s2 = inlined_call_operand.vmem [shape: bf16[32,24], index: 2, kind: input, shape index: {}]
  %s3 = inlined_call_operand.vmem [shape: bf16[20,32], index: 3, kind: input, shape index: {}]
  %s4 = inlined_call_operand.vmem [shape: f32[3,24,20], index: 4, kind: input, shape index: {}]
  %s5 = inlined_call_operand.hbm [shape: f32[2,3,32,32], index: 5, kind: input, shape index: {}, may-alias: {5,6}]
  %s6 = inlined_call_operand.hbm [shape: f32[2,3,32,32], index: 6, kind: output, shape index: {}, may-alias: {5,6}]
  %s7 = sld [smem:[#allocation0]]
  $region65: #{tpu_custom_call.1} parent=0
    _
  %s9 = ssub.s32 1, %s7
  %s10 = scalar_select 0, %s9, %s7
  $region1: #{tpu_custom_call.1} parent=0
    #allocation2 [shape = 'u8[512]{0}', space=smem, size = 0x200, scoped, tag = 'input window, operand 0, single buffered']
    #allocation3 [shape = 's32[2]{0}', space=sflag, size = 0x8, scoped, tag = 'scoped memory for tpu_custom_call.1']
    #allocation4 [shape = 's32[2]{0}', space=sflag, size = 0x8, scoped, tag = 'scoped memory for tpu_custom_call.1']
    #allocation5 [shape = 'u8[512]{0}', space=smem, size = 0x200, scoped, tag = 'input window, operand 1, single buffered']
    #allocation6 [shape = 's32[1]{0}', space=sflag, size = 0x4, scoped, tag = 'scoped memory for tpu_custom_call.1']
    #allocation7 [shape = 'u8[32768]{0}', space=vmem, size = 0x8000, scoped, tag = 'output window, operand 0']
    %11 = vsyncpa [#allocation4], 0
    %12 = vsyncpa [#allocation6], 0
    %13 = vsyncpa [#allocation3], 0
    %s14 = scalar_lea.sflag [#allocation3], 1
    %15 = vsyncpa %s14, 0
    loop: start=0, step=1, limit=5
    $region2: #{tpu_custom_call.1} parent=1 // loop_pre_header
      _
    $region3: #{tpu_custom_call.1} parent=1 // loop_header
      %s17 = sphi 0, %s21
      %p18 = scmp.ge.s32.totalorder %s17, 5
      %s24 = sphi 0, %s36
      %s25 = sphi 0, %s32
      %s26 = sphi 0, %s24
      %s27 = sphi 0, %s25
      %s28 = sphi 0, %s26
      %s29 = sphi 0, %s27
      %s37 = sphi 0, %s37
      %s39 = sphi 0, %s37
      %s40 = sphi 0, %s39
      %s54 = sphi 0, %s40
      %s58 = sphi 0, %s58
      %s60 = sphi 0, %s58
      %s61 = sphi 0, %s60
      %s75 = sphi 0, %s61
      %s79 = sphi 0, %s79
      %s81 = sphi 0, %s79
      %s82 = sphi 0, %s81
      %s96 = sphi 0, %s82
      %s102 = sphi 0, %s104
      %s105 = sphi 0, %s102
      %s106 = sphi 0, %s105
      %s122 = sphi 0, %s106
      %s130 = sphi 0, %s132
      %s133 = sphi 0, %s130
      %s134 = sphi 0, %s133
      %s150 = sphi 0, %s134
      %s156 = sphi 0, %s158
      %s159 = sphi 0, %s156
      %s160 = sphi 0, %s159
      %s176 = sphi 0, %s160
    $region4: #{tpu_custom_call.1} parent=1 // loop_header_branch
      %20 = sbr.rel (%p18) target = $region8
    $region5: #{tpu_custom_call.1} parent=1 // loop_body
      %s22 = ssub.s32 %s17, 1
      %s23 = ssub.s32 %s17, 2
      %s30 = sadd.s32 1, %s25
      %p31 = scmp.ge.s32.totalorder %s30, 1
      %s32 = scalar_select %p31, 0, %s30
      %s33 = sadd.s32 1, %s24
      %s34 = scalar_select %p31, %s33, %s24
      %p35 = scmp.ge.s32.totalorder %s34, 3
      %s36 = scalar_select %p35, 0, %s34
      %s38 = sadd.s32 %s37, 1
      %p41 = scmp.eq.s32.totalorder %s17, 2
      %p42 = scmp.ne.s32.totalorder %s37, %s39
      %p43 = scmp.eq.s32.totalorder %s17, 0
      %p44 = por %p42, %p43
      %p45 = scmp.ne.s32.totalorder %s37, %s39
      %p46 = scmp.eq.s32.totalorder %s22, 2
      %p47 = por %p45, %p46
      %p48 = scmp.ne.s32.totalorder %s39, %s40
      %p49 = scmp.eq.s32.totalorder %s22, 0
      %p50 = por %p48, %p49
      %p51 = scmp.ne.s32.totalorder %s39, %s40
      %p52 = scmp.eq.s32.totalorder %s23, 2
      %p53 = por %p51, %p52
      %p55 = scmp.ne.s32.totalorder %s40, %s54
      %p56 = scmp.eq.s32.totalorder %s23, 0
      %p57 = por %p55, %p56
      %s59 = sadd.s32 %s58, 1
      %p62 = scmp.eq.s32.totalorder %s17, 2
      %p63 = scmp.ne.s32.totalorder %s58, %s60
      %p64 = scmp.eq.s32.totalorder %s17, 0
      %p65 = por %p63, %p64
      %p66 = scmp.ne.s32.totalorder %s58, %s60
      %p67 = scmp.eq.s32.totalorder %s22, 2
      %p68 = por %p66, %p67
      %p69 = scmp.ne.s32.totalorder %s60, %s61
      %p70 = scmp.eq.s32.totalorder %s22, 0
      %p71 = por %p69, %p70
      %p72 = scmp.ne.s32.totalorder %s60, %s61
      %p73 = scmp.eq.s32.totalorder %s23, 2
      %p74 = por %p72, %p73
      %p76 = scmp.ne.s32.totalorder %s61, %s75
      %p77 = scmp.eq.s32.totalorder %s23, 0
      %p78 = por %p76, %p77
      %s80 = sadd.s32 %s79, 1
      %p83 = scmp.eq.s32.totalorder %s17, 2
      %p84 = scmp.ne.s32.totalorder %s79, %s81
      %p85 = scmp.eq.s32.totalorder %s17, 0
      %p86 = por %p84, %p85
      %p87 = scmp.ne.s32.totalorder %s79, %s81
      %p88 = scmp.eq.s32.totalorder %s22, 2
      %p89 = por %p87, %p88
      %p90 = scmp.ne.s32.totalorder %s81, %s82
      %p91 = scmp.eq.s32.totalorder %s22, 0
      %p92 = por %p90, %p91
      %p93 = scmp.ne.s32.totalorder %s81, %s82
      %p94 = scmp.eq.s32.totalorder %s23, 2
      %p95 = por %p93, %p94
      %p97 = scmp.ne.s32.totalorder %s82, %s96
      %p98 = scmp.eq.s32.totalorder %s23, 0
      %p99 = por %p97, %p98
      %s100 = ssub.s32 %s25, %s32
      %p101 = scmp.eq.s32.totalorder %s100, 0
      %s103 = sadd.s32 %s102, 1
      %s104 = scalar_select %p101, %s102, %s103
      %p107 = pneg %p101
      %p108 = scmp.eq.s32.totalorder %s17, 2
      %p109 = por %p107, %p108
      %p110 = scmp.ne.s32.totalorder %s102, %s105
      %p111 = scmp.eq.s32.totalorder %s17, 0
      %p112 = por %p110, %p111
      %p113 = scmp.ne.s32.totalorder %s102, %s105
      %p114 = scmp.eq.s32.totalorder %s22, 2
      %p115 = por %p113, %p114
      %p116 = scmp.ne.s32.totalorder %s105, %s106
      %p117 = scmp.eq.s32.totalorder %s22, 0
      %p118 = por %p116, %p117
      %p119 = scmp.ne.s32.totalorder %s105, %s106
      %p120 = scmp.eq.s32.totalorder %s23, 2
      %p121 = por %p119, %p120
      %p123 = scmp.ne.s32.totalorder %s106, %s122
      %p124 = scmp.eq.s32.totalorder %s23, 0
      %p125 = por %p123, %p124
      %s126 = ssub.s32 %s24, %s36
      %s127 = ssub.s32 %s25, %s32
      %s128 = sor.u32 %s126, %s127
      %p129 = scmp.eq.s32.totalorder %s128, 0
      %s131 = sadd.s32 %s130, 1
      %s132 = scalar_select %p129, %s130, %s131
      %p135 = pneg %p129
      %p136 = scmp.eq.s32.totalorder %s17, 2
      %p137 = por %p135, %p136
      %p138 = scmp.ne.s32.totalorder %s130, %s133
      %p139 = scmp.eq.s32.totalorder %s17, 0
      %p140 = por %p138, %p139
      %p141 = scmp.ne.s32.totalorder %s130, %s133
      %p142 = scmp.eq.s32.totalorder %s22, 2
      %p143 = por %p141, %p142
      %p144 = scmp.ne.s32.totalorder %s133, %s134
      %p145 = scmp.eq.s32.totalorder %s22, 0
      %p146 = por %p144, %p145
      %p147 = scmp.ne.s32.totalorder %s133, %s134
      %p148 = scmp.eq.s32.totalorder %s23, 2
      %p149 = por %p147, %p148
      %p151 = scmp.ne.s32.totalorder %s134, %s150
      %p152 = scmp.eq.s32.totalorder %s23, 0
      %p153 = por %p151, %p152
      %s154 = ssub.s32 %s24, %s36
      %p155 = scmp.eq.s32.totalorder %s154, 0
      %s157 = sadd.s32 %s156, 1
      %s158 = scalar_select %p155, %s156, %s157
      %p161 = pneg %p155
      %p162 = scmp.eq.s32.totalorder %s17, 2
      %p163 = por %p161, %p162
      %p164 = scmp.ne.s32.totalorder %s156, %s159
      %p165 = scmp.eq.s32.totalorder %s17, 0
      %p166 = por %p164, %p165
      %p167 = scmp.ne.s32.totalorder %s156, %s159
      %p168 = scmp.eq.s32.totalorder %s22, 2
      %p169 = por %p167, %p168
      %p170 = scmp.ne.s32.totalorder %s159, %s160
      %p171 = scmp.eq.s32.totalorder %s22, 0
      %p172 = por %p170, %p171
      %p173 = scmp.ne.s32.totalorder %s159, %s160
      %p174 = scmp.eq.s32.totalorder %s23, 2
      %p175 = por %p173, %p174
      %p177 = scmp.ne.s32.totalorder %s160, %s176
      %p178 = scmp.eq.s32.totalorder %s23, 0
      %p179 = por %p177, %p178
      %p180 = scmp.le.s32.totalorder 1, %s17
      %p181 = scmp.lt.s32.totalorder %s17, 4
      %p182 = pnand %p180, %p181
      %p183 = pneg %p182
      // Predicated region
      $region9: #{tpu_custom_call.1} parent=5 // pred_check
        _
      $region10: #{tpu_custom_call.1} parent=5 // pred_check_branch
        %185 = sbr.rel (%p182) target = $region12
      $region11: #{tpu_custom_call.1} parent=5 // pred_region
        %s186 = ssub.s32 %s17, 1
        // Predicated region
        $region13: #{tpu_custom_call.1} parent=11 // pred_check
          %p187 = pneg %p50
        $region14: #{tpu_custom_call.1} parent=11 // pred_check_branch
          %189 = sbr.rel (%p187) target = $region16
        $region15: #{tpu_custom_call.1} parent=11 // pred_region
          %s191 = ssub.s32 16, 16
          %192 = vsyncadd [#allocation4], %s191
          %s194 = sshll.u32 %s0, 4
          %s195 = int_to_ptr.vmem [resolvable:$true] %s194
          %197 = dma.vmem_to_smem %s195, 16, [#allocation2], [#allocation4]
        $region16: #{tpu_custom_call.1} parent=11 // pred_fallthru
          _
        // Predicated region
        $region17: #{tpu_custom_call.1} parent=11 // pred_check
          %p198 = pneg %p71
        $region18: #{tpu_custom_call.1} parent=11 // pred_check_branch
          %200 = sbr.rel (%p198) target = $region20
        $region19: #{tpu_custom_call.1} parent=11 // pred_region
          %s202 = ssub.s32 16, 16
          %203 = vsyncadd [#allocation6], %s202
          %s205 = sshll.u32 %s1, 4
          %s206 = int_to_ptr.vmem [resolvable:$true] %s205
          %208 = dma.vmem_to_smem %s206, 16, [#allocation5], [#allocation6]
        $region20: #{tpu_custom_call.1} parent=11 // pred_fallthru
          _
        // Predicated region
        $region21: #{tpu_custom_call.1} parent=11 // pred_check
          %p209 = pneg %p92
        $region22: #{tpu_custom_call.1} parent=11 // pred_check_branch
          %211 = sbr.rel (%p209) target = $region24
        $region23: #{tpu_custom_call.1} parent=11 // pred_region
          _
        $region24: #{tpu_custom_call.1} parent=11 // pred_fallthru
          _
        // Predicated region
        $region25: #{tpu_custom_call.1} parent=11 // pred_check
          %p212 = pneg %p118
        $region26: #{tpu_custom_call.1} parent=11 // pred_check_branch
          %214 = sbr.rel (%p212) target = $region28
        $region27: #{tpu_custom_call.1} parent=11 // pred_region
          %s215 = smul.u32 3, %s27
          %p216 = scmp.lt.s32.totalorder %s215, 2
          %s217 = scalar_select %p216, %s215, 2
          %s218 = smul.addr %s217, 4
          %s219 = scalar_lea.vmem %s3, %s218
          %s220 = smul.u32 3, %s27
        $region28: #{tpu_custom_call.1} parent=11 // pred_fallthru
          _
      $region12: #{tpu_custom_call.1} parent=5 // pred_fallthru
        _
      %p221 = scmp.lt.s32.totalorder %s17, 3
      // Predicated region
      $region29: #{tpu_custom_call.1} parent=5 // pred_check
        %p222 = pneg %p221
      $region30: #{tpu_custom_call.1} parent=5 // pred_check_branch
        %224 = sbr.rel (%p222) target = $region32
      $region31: #{tpu_custom_call.1} parent=5 // pred_region
        // Predicated region
        $region33: #{tpu_custom_call.1} parent=31 // pred_check
          %p225 = pneg %p140
        $region34: #{tpu_custom_call.1} parent=31 // pred_check_branch
          %227 = sbr.rel (%p225) target = $region36
        $region35: #{tpu_custom_call.1} parent=31 // pred_region
          %p228 = scmp.lt.s32.totalorder %s24, 2
          %s229 = scalar_select %p228, %s24, 2
          %p230 = scmp.lt.s32.totalorder %s25, 0
          %s231 = scalar_select %p230, %s25, 0
          %s232 = smul.addr %s229, 3
          %s233 = sadd.s32 %s231, %s232
          %s234 = smul.addr %s233, 8
          %s235 = scalar_lea.vmem %s4, %s234
        $region36: #{tpu_custom_call.1} parent=31 // pred_fallthru
          _
      $region32: #{tpu_custom_call.1} parent=5 // pred_fallthru
        _
      %p236 = scmp.le.s32.totalorder 1, %s17
      %p237 = scmp.lt.s32.totalorder %s17, 4
      %p238 = pnand %p236, %p237
      %p239 = pneg %p238
      // Predicated region
      $region37: #{tpu_custom_call.1} parent=5 // pred_check
        _
      $region38: #{tpu_custom_call.1} parent=5 // pred_check_branch
        %241 = sbr.rel (%p238) target = $region40
      $region39: #{tpu_custom_call.1} parent=5 // pred_region
        %s242 = ssub.s32 %s17, 1
        // Predicated region
        $region41: #{tpu_custom_call.1} parent=39 // pred_check
          %p243 = pneg %p50
        $region42: #{tpu_custom_call.1} parent=39 // pred_check_branch
          %245 = sbr.rel (%p243) target = $region44
        $region43: #{tpu_custom_call.1} parent=39 // pred_region
          %246 = dma.done [#allocation4], 16
        $region44: #{tpu_custom_call.1} parent=39 // pred_fallthru
          _
        // Predicated region
        $region45: #{tpu_custom_call.1} parent=39 // pred_check
          %p247 = pneg %p71
        $region46: #{tpu_custom_call.1} parent=39 // pred_check_branch
          %249 = sbr.rel (%p247) target = $region48
        $region47: #{tpu_custom_call.1} parent=39 // pred_region
          %250 = dma.done [#allocation6], 16
        $region48: #{tpu_custom_call.1} parent=39 // pred_fallthru
          _
        %251 = sfence
        %p252 = pneg %p50
        %p253 = pneg %p47
        %p254 = pneg %p71
        %p255 = pneg %p68
        %p256 = pneg %p92
        %p257 = pneg %p89
        %s258 = smul.u32 3, %s27
        %p259 = scmp.lt.s32.totalorder %s258, 2
        %s260 = scalar_select %p259, %s258, 2
        %s261 = smul.addr %s260, 4
        %s262 = scalar_lea.vmem %s3, %s261
        %p263 = pneg %p118
        %p264 = pneg %p115
        %p265 = scmp.lt.s32.totalorder %s26, 2
        %s266 = scalar_select %p265, %s26, 2
        %p267 = scmp.lt.s32.totalorder %s27, 0
        %s268 = scalar_select %p267, %s27, 0
        %s269 = smul.addr %s266, 3
        %s270 = sadd.s32 %s268, %s269
        %s271 = smul.addr %s270, 8
        %s272 = scalar_lea.vmem %s4, %s271
        %p273 = pneg %p146
        %p274 = pneg %p143
        %p275 = pneg %p172
        %p276 = pneg %p169
        %s277 = sand.u32 %s159, 1
        %s278 = scalar_lea.sflag [#allocation3], %s277
        %s279 = sand.u32 %s159, 1
        %s280 = smul.addr %s279, 32
        %s281 = scalar_lea.vmem [#allocation7], %s280
        %s282 = smul.u32 3, %s27
        %p283 = scmp.lt.s32.totalorder %s282, 2
        %s284 = scalar_select %p283, %s282, 2
        %s285 = smul.addr %s284, 4
        %s286 = scalar_lea.vmem %s3, %s285
        %s287 = smul.u32 3, %s27
        %p288 = scmp.lt.s32.totalorder %s26, 2
        %s289 = scalar_select %p288, %s26, 2
        %p290 = scmp.lt.s32.totalorder %s27, 0
        %s291 = scalar_select %p290, %s27, 0
        %s292 = smul.addr %s289, 3
        %s293 = sadd.s32 %s291, %s292
        %s294 = smul.addr %s293, 8
        %s295 = scalar_lea.vmem %s4, %s294
        %v297 = vld [vmem:[%s295] sm:$0xff]
        %v298 = vld [vmem:[%s295 + $0x8] sm:$0xff]
        %v299 = vld [vmem:[%s295 + $0x10] sm:$0xff]
        %s300 = sld [smem:[#allocation2 + %s26]]
        %v301 = vstv %s300
        %v302 = vsub.f32 %v297, %v301
        %v303 = vsub.f32 %v298, %v301
        %v304 = vsub.f32 %v299, %v301
        %s305 = sld [smem:[#allocation5 + %s26]]
        %v306 = vstv %s305
        %v307 = vmul.f32 %v302, %v306
        %v308 = vmul.f32 %v303, %v306
        %v309 = vmul.f32 %v304, %v306
        %v310 = vpack.c.bf16 %v308, %v307
        %v311 = vpack.c.bf16 %v309, %v309
        %v312 = vld [vmem:[%s2] sm:$0xf]
        %v313 = vld [vmem:[%s2 + $0x4] sm:$0xf]
        %v314 = vld [vmem:[%s2 + $0x8] sm:$0xf]
        %v315 = vld [vmem:[%s2 + $0xc] sm:$0xf]
        %v320 = vunpack.c.l.b16 %v312
        %v321 = vunpack.c.l.b16 %v313
        %v322 = vunpack.c.l.b16 %v314
        %v323 = vunpack.c.l.b16 %v315
        %v324 = vpack.c.b16 %v321, %v320
        %v325 = vpack.c.b16 %v323, %v322
        %vm326 = vcmask 195584
        %v328 = vsel %vm326, %v324, 0
        %v331 = vsel %vm326, %v325, 0
        %vm333 = vcmask 1043456
        %v335 = vsel %vm333, %v311, 0
        %337 = vmatprep.subr.bf16.mxu0 0
        %338 = vmatpush1.bf16.msra.mxu0 %v310
        %339 = vmatprep.subr.bf16.mxu0 0
        %340 = vmatpush1.bf16.msra.mxu0 %v335
        %341 = vmatprep.subr.bf16.mxu0 0
        %342 = vmatpush1.bf16.msra.mxu0 0
        %343 = vmatprep.subr.bf16.mxu0 0
        %344 = vmatpush1.bf16.msra.mxu0 0
        %345 = vmatprep.subr.bf16.mxu0 0
        %346 = vmatpush1.bf16.msra.mxu0 0
        %347 = vmatprep.subr.bf16.mxu0 0
        %348 = vmatpush1.bf16.msra.mxu0 0
        %349 = vmatprep.subr.bf16.mxu0 0
        %350 = vmatpush1.bf16.msra.mxu0 0
        %351 = vmatprep.subr.bf16.mxu0 0
        %352 = vmatpush1.bf16.msra.mxu0 0
        %353 = vmatprep.subr.bf16.mxu0 0
        %354 = vmatpush1.bf16.msra.mxu0 0
        %355 = vmatprep.subr.bf16.mxu0 0
        %356 = vmatpush1.bf16.msra.mxu0 0
        %357 = vmatprep.subr.bf16.mxu0 0
        %358 = vmatpush1.bf16.msra.mxu0 0
        %359 = vmatprep.subr.bf16.mxu0 0
        %360 = vmatpush1.bf16.msra.mxu0 0
        %361 = vmatprep.subr.bf16.mxu0 0
        %362 = vmatpush1.bf16.msra.mxu0 0
        %363 = vmatprep.subr.bf16.mxu0 0
        %364 = vmatpush1.bf16.msra.mxu0 0
        %365 = vmatprep.subr.bf16.mxu0 0
        %366 = vmatpush1.bf16.msra.mxu0 0
        %367 = vmatprep.subr.bf16.mxu0 0
        %368 = vmatpush1.bf16.msra.mxu0 0
        %369 = vmatprep.mubr.bf16.mxu0 0
        %370 = vmatmul.mubr.bf16.gmra.mrb[0].mxu0 %v328
        %v371 = vpop.f32.mrb[0].mxu0
        %v372 = vadd.f32 0.0, %v371
        %v373 = vpop.f32.mrb[0].mxu0
        %v374 = vpop.f32.mrb[0].mxu0
        %v375 = vadd.f32 0.0, %v374
        %v376 = vpop.f32.mrb[0].mxu0
        %377 = vmatprep.mubr.bf16.mxu0 0
        %378 = vmatmul.mubr.bf16.gmra.mrb[0].mxu0 %v331
        %v379 = vpop.f32.mrb[0].mxu0
        %v380 = vadd.f32 0.0, %v379
        %v381 = vpop.f32.mrb[0].mxu0
        %v382 = vpop.f32.mrb[0].mxu0
        %v383 = vadd.f32 0.0, %v382
        %v384 = vpop.f32.mrb[0].mxu0
        %385 = vdwg.mxu0
        %v386 = vpack.c.bf16 %v375, %v372
        %v387 = vpack.c.bf16 %v383, %v380
        %v388 = vld [vmem:[%s286] sm:$0xf]
        %v389 = vld [vmem:[%s286 + $0x4] sm:$0xf]
        %v390 = vld [vmem:[%s286 + $0x8] sm:$0x3]
        %v394 = vunpack.c.l.b16 %v388
        %v395 = vunpack.c.l.b16 %v389
        %v396 = vunpack.c.l.b16 %v390
        %v397 = vpack.c.b16 %v395, %v394
        %v398 = vpack.c.b16 %v396, %v396
        %vm400 = vcmask 162816
        %v402 = vsel %vm400, %v386, 0
        %v405 = vsel %vm400, %v387, 0
        %vm407 = vcmask 1041408
        %v409 = vsel %vm407, %v398, 0
        %411 = vmatprep.subr.bf16.mxu0 0
        %412 = vmatpush1.bf16.msra.mxu0 %v397
        %413 = vmatprep.subr.bf16.mxu0 0
        %414 = vmatpush1.bf16.msra.mxu0 %v409
        %415 = vmatprep.subr.bf16.mxu0 0
        %416 = vmatpush1.bf16.msra.mxu0 0
        %417 = vmatprep.subr.bf16.mxu0 0
        %418 = vmatpush1.bf16.msra.mxu0 0
        %419 = vmatprep.subr.bf16.mxu0 0
        %420 = vmatpush1.bf16.msra.mxu0 0
        %421 = vmatprep.subr.bf16.mxu0 0
        %422 = vmatpush1.bf16.msra.mxu0 0
        %423 = vmatprep.subr.bf16.mxu0 0
        %424 = vmatpush1.bf16.msra.mxu0 0
        %425 = vmatprep.subr.bf16.mxu0 0
        %426 = vmatpush1.bf16.msra.mxu0 0
        %427 = vmatprep.subr.bf16.mxu0 0
        %428 = vmatpush1.bf16.msra.mxu0 0
        %429 = vmatprep.subr.bf16.mxu0 0
        %430 = vmatpush1.bf16.msra.mxu0 0
        %431 = vmatprep.subr.bf16.mxu0 0
        %432 = vmatpush1.bf16.msra.mxu0 0
        %433 = vmatprep.subr.bf16.mxu0 0
        %434 = vmatpush1.bf16.msra.mxu0 0
        %435 = vmatprep.subr.bf16.mxu0 0
        %436 = vmatpush1.bf16.msra.mxu0 0
        %437 = vmatprep.subr.bf16.mxu0 0
        %438 = vmatpush1.bf16.msra.mxu0 0
        %439 = vmatprep.subr.bf16.mxu0 0
        %440 = vmatpush1.bf16.msra.mxu0 0
        %441 = vmatprep.subr.bf16.mxu0 0
        %442 = vmatpush1.bf16.msra.mxu0 0
        %443 = vmatprep.mubr.bf16.mxu0 0
        %444 = vmatmul.mubr.bf16.gmra.mrb[0].mxu0 %v402
        %v445 = vpop.f32.mrb[0].mxu0
        %v446 = vadd.f32 0.0, %v445
        %v447 = vpop.f32.mrb[0].mxu0
        %v448 = vpop.f32.mrb[0].mxu0
        %v449 = vadd.f32 0.0, %v448
        %v450 = vpop.f32.mrb[0].mxu0
        %451 = vmatprep.mubr.bf16.mxu0 0
        %452 = vmatmul.mubr.bf16.gmra.mrb[0].mxu0 %v405
        %v453 = vpop.f32.mrb[0].mxu0
        %v454 = vadd.f32 0.0, %v453
        %v455 = vpop.f32.mrb[0].mxu0
        %v456 = vpop.f32.mrb[0].mxu0
        %v457 = vadd.f32 0.0, %v456
        %v458 = vpop.f32.mrb[0].mxu0
        %459 = vdwg.mxu0
        %p460 = scmp.eq.s32.totalorder %s27, 0
        // Predicated region
        $region49: #{tpu_custom_call.1} parent=39 // pred_check
          %p461 = pneg %p460
        $region50: #{tpu_custom_call.1} parent=39 // pred_check_branch
          %463 = sbr.rel (%p461) target = $region52
        $region51: #{tpu_custom_call.1} parent=39 // pred_region
          %vm464 = vcmask 261120
          %465 = vst.msk [vmem:[%s281] sm:$0xff] %vm464, 0.0
          %466 = vst.msk [vmem:[%s281 + $0x8] sm:$0xff] %vm464, 0.0
          %467 = vst.msk [vmem:[%s281 + $0x10] sm:$0xff] %vm464, 0.0
          %468 = vst.msk [vmem:[%s281 + $0x18] sm:$0xff] %vm464, 0.0
        $region52: #{tpu_custom_call.1} parent=39 // pred_fallthru
          _
        %v469 = vld [vmem:[%s281] sm:$0xff]
        %v470 = vld [vmem:[%s281 + $0x8] sm:$0xff]
        %v471 = vld [vmem:[%s281 + $0x10] sm:$0xff]
        %v472 = vld [vmem:[%s281 + $0x18] sm:$0xff]
        %v473 = vadd.f32 %v469, %v446
        %v474 = vadd.f32 %v470, %v449
        %v475 = vadd.f32 %v471, %v454
        %v476 = vadd.f32 %v472, %v457
        %vm477 = vcmask 261120
        %478 = vst.msk [vmem:[%s281] sm:$0xff] %vm477, %v473
        %479 = vst.msk [vmem:[%s281 + $0x8] sm:$0xff] %vm477, %v474
        %480 = vst.msk [vmem:[%s281 + $0x10] sm:$0xff] %vm477, %v475
        %481 = vst.msk [vmem:[%s281 + $0x18] sm:$0xff] %vm477, %v476
        %s482 = sand.u32 %s159, 1
        %s483 = scalar_lea.sflag [#allocation3], %s482
        %s484 = sand.u32 %s159, 1
        %s485 = smul.addr %s484, 32
        %s486 = scalar_lea.vmem [#allocation7], %s485
        // Predicated region
        $region53: #{tpu_custom_call.1} parent=39 // pred_check
          %p487 = pneg %p169
        $region54: #{tpu_custom_call.1} parent=39 // pred_check_branch
          %489 = sbr.rel (%p487) target = $region56
        $region55: #{tpu_custom_call.1} parent=39 // pred_region
          %s491 = ssub.s32 512, 512
          %492 = vsyncadd %s483, %s491
          %s493 = smul.addr %s26, 4
          %s494 = smul.addr %s493, 128
          %s495 = scalar_lea.hbm %s6, %s494
          %s496 = sshll.u32 %s486, 4
          %s497 = int_to_ptr.vmem [resolvable:$true] %s496
          %502 = dma.vmem_to_hbm [thread:$0]  %s497, 512, %s495, %s483, 128, 128, 8
        $region56: #{tpu_custom_call.1} parent=39 // pred_fallthru
          _
      $region40: #{tpu_custom_call.1} parent=5 // pred_fallthru
        _
      %p503 = scmp.le.s32.totalorder 2, %s17
      // Predicated region
      $region57: #{tpu_custom_call.1} parent=5 // pred_check
        %p504 = pneg %p503
      $region58: #{tpu_custom_call.1} parent=5 // pred_check_branch
        %506 = sbr.rel (%p504) target = $region60
      $region59: #{tpu_custom_call.1} parent=5 // pred_region
        %s507 = ssub.s32 %s17, 2
        // Predicated region
        $region61: #{tpu_custom_call.1} parent=59 // pred_check
          %p508 = pneg %p175
        $region62: #{tpu_custom_call.1} parent=59 // pred_check_branch
          %510 = sbr.rel (%p508) target = $region64
        $region63: #{tpu_custom_call.1} parent=59 // pred_region
          %s511 = sand.u32 %s160, 1
          %s512 = scalar_lea.sflag [#allocation3], %s511
          %s513 = sand.u32 %s160, 1
          %s514 = smul.addr %s513, 32
          %s515 = scalar_lea.vmem [#allocation7], %s514
          %516 = dma.done %s512, 512
        $region64: #{tpu_custom_call.1} parent=59 // pred_fallthru
          _
      $region60: #{tpu_custom_call.1} parent=5 // pred_fallthru
        _
    $region6: #{tpu_custom_call.1} parent=1 // loop_footer
      %s21 = sadd.s32 1, %s17
    $region7: #{tpu_custom_call.1} parent=1 // loop_footer_branch
      %16 = sbr.rel target = $region3
    $region8: #{tpu_custom_call.1} parent=1 // loop_exit
      _
    %517 = vsyncpa [#allocation3], 1
    %s518 = scalar_lea.sflag [#allocation3], 1
    %519 = vsyncpa %s518, 1
    %520 = vsyncpa [#allocation4], 1
    %s521 = scalar_lea.sflag [#allocation4], 1
    %522 = vsyncpa %s521, 1
    %523 = vsyncpa [#allocation6], 1

</llo_original>
